<compile_context>
chip_gen: v5e
topology: v5e:2x2
jax: 0.10.0
libtpu: 0.0.40
codegen_flags: <defaults>
</compile_context>

<pallas_src>
import functools

import jax
import jax.numpy as jnp
from jax.experimental import pallas as pl
from jax.experimental.pallas import tpu as pltpu

# ---------------- model config (small, consistent with the module) ----------
BATCH = 2
SEQ = 8
INPUT_DIM = 32
HIDDEN = 256          # fixed by nn.Linear(input_dim, 256)
NUM_EXPERTS = 8
TOP_K = 2

_LANE = 128
_SUBLANE = 8


def _round_up(a, b):
    return ((a + b - 1) // b) * b


# ---------------- Pallas kernel ----------------------------------------------
def expert_gating_kernel(x_ref, w1_ref, b1_ref, w2_ref, b2_ref,
                         rw_ref, idx_ref, *, num_experts, top_k):
    tile_b, S, D = x_ref.shape
    E_pad = w2_ref.shape[1]                       # experts padded to lane width

    # ---- mean over S BEFORE Linear1 ------------------------------------------
    # Mean is linear, so reducing first is exact, matches the reference op
    # order, cuts Linear1 MXU work by S, and avoids a [tile_b*S, H] f32
    # intermediate. The reduce is a small sublane (XLU) reduce on [tile_b,S,D].
    xm = jnp.mean(x_ref[...], axis=1)                                # [tile_b, D]

    # ---- Linear1 + ReLU -------------------------------------------------------
    # Operands stay in their native dtype (bf16 would hit native MXU rate);
    # accumulate in f32 via preferred_element_type.
    h = jnp.dot(xm, w1_ref[...], preferred_element_type=jnp.float32)
    h = jnp.maximum(h + b1_ref[...].astype(jnp.float32), 0.0)       # [tile_b, H] f32

    # ---- Linear2 into the lane-padded expert dimension ------------------------
    gates = jnp.dot(h.astype(w2_ref.dtype), w2_ref[...],
                    preferred_element_type=jnp.float32)
    gates = gates + b2_ref[...].astype(jnp.float32)                 # [tile_b, E_pad]

    lane = jax.lax.broadcasted_iota(jnp.int32, (tile_b, E_pad), 1)
    gates = jnp.where(lane < num_experts, gates, -jnp.inf)          # mask pad lanes

    # ---- numerically-stable softmax (padded lanes -> exactly 0), f32 epilogue -
    m = jnp.max(gates, axis=-1, keepdims=True)
    e = jnp.exp(gates - m)
    probs = e / jnp.sum(e, axis=-1, keepdims=True)                  # [tile_b, E_pad]

    # ---- iterative top-k (k small & static): argmax, record, mask, repeat ----
    # Lowest-index tie-break matches jax.lax.top_k / torch.topk. Padded lanes
    # sit at higher indices than real experts, so ties at 0 resolve correctly.
    vals, idxs = [], []
    p = probs
    for _ in range(top_k):
        v = jnp.max(p, axis=-1, keepdims=True)                      # [tile_b, 1]
        i = jnp.min(jnp.where(p == v, lane, E_pad),
                    axis=-1, keepdims=True)                         # [tile_b, 1]
        vals.append(v)
        idxs.append(i)
        p = jnp.where(lane == i, -1.0, p)                           # probs >= 0

    total = vals[0]
    for v in vals[1:]:
        total = total + v
    inv_total = 1.0 / total                 # exact renorm (approx recip not used)

    # ---- lane-dense output slabs (full 128-wide unmasked stores) -------------
    rw = jnp.zeros((tile_b, E_pad), jnp.float32)
    ids = jnp.zeros((tile_b, E_pad), jnp.int32)
    for k in range(top_k):
        rw = jnp.where(lane == k, vals[k] * inv_total, rw)
        ids = jnp.where(lane == k, idxs[k], ids)
    rw_ref[...] = rw
    idx_ref[...] = ids


# ---------------- one-time parameter prep (hoisted out of the hot path) ------
def prepare_gating_params(w1, b1, w2, b2):
    """Pad / reshape the gating weights ONCE ('pad once offline').

    Returns (w1, b1_row, w2_padded, b2_padded, num_experts); the padded arrays
    are reused on every call so no per-call pad/reshape ops hit HBM.
    """
    H = w1.shape[1]
    E = w2.shape[1]
    E_pad = _round_up(E, _LANE)
    w2_p = jnp.pad(w2, ((0, 0), (0, E_pad - E)))
    b2_p = jnp.pad(jnp.reshape(b2, (1, E)), ((0, 0), (0, E_pad - E)))
    b1_r = jnp.reshape(b1, (1, H))
    return w1, b1_r, w2_p, b2_p, E


# ---------------- jitted per-call wrapper -------------------------------------
@functools.partial(jax.jit, static_argnames=("num_experts", "top_k"))
def expert_gating(x, w1, b1_r, w2_p, b2_p, *, num_experts, top_k):
    B, S, D = x.shape
    H = w1.shape[1]
    E_pad = w2_p.shape[1]
    top_k = min(top_k, num_experts)

    # Batch tiling: >= 8 sublanes per tile, cap 512 rows per grid step, and
    # split into >= 2 grid steps whenever B allows so v7x's 2nd TC gets work.
    B_r = _round_up(B, _SUBLANE)
    tile_b = min(512, B_r)
    if B_r > _SUBLANE and B_r // tile_b < 2:
        tile_b = _round_up(pl.cdiv(B_r, 2), _SUBLANE)
    B_pad = _round_up(B_r, tile_b)
    grid = (B_pad // tile_b,)

    # Batch pad fuses under jit. Padded rows flow through softmax/top-k and
    # produce well-defined (but unused) values; they are sliced off below and
    # must never be consumed directly from the padded slabs.
    x_p = x if B_pad == B else jnp.pad(x, ((0, B_pad - B), (0, 0), (0, 0)))

    kernel = functools.partial(expert_gating_kernel,
                               num_experts=num_experts, top_k=top_k)

    rw_pad, idx_pad = pl.pallas_call(
        kernel,
        grid=grid,
        in_specs=[
            # x: pipelined over batch tiles
            pl.BlockSpec((tile_b, S, D), lambda i: (i, 0, 0)),
            # weights/biases: VMEM-resident across all grid steps
            pl.BlockSpec((D, H), lambda i: (0, 0)),
            pl.BlockSpec((1, H), lambda i: (0, 0)),
            pl.BlockSpec((H, E_pad), lambda i: (0, 0)),
            pl.BlockSpec((1, E_pad), lambda i: (0, 0)),
        ],
        out_specs=(
            pl.BlockSpec((tile_b, E_pad), lambda i: (i, 0)),
            pl.BlockSpec((tile_b, E_pad), lambda i: (i, 0)),
        ),
        out_shape=(
            jax.ShapeDtypeStruct((B_pad, E_pad), jnp.float32),   # routing weights
            jax.ShapeDtypeStruct((B_pad, E_pad), jnp.int32),     # expert indices
        ),
        compiler_params=pltpu.CompilerParams(
            dimension_semantics=("parallel",)),                  # v7x: 2 TCs
    )(x_p, w1, b1_r, w2_p, b2_p)

    # Slice off batch padding and lane padding; fuses under jit.
    return rw_pad[:B, :top_k], idx_pad[:B, :top_k]


# ---------------- pure-JAX reference (for sanity check) ----------------------
def expert_gating_ref(x, w1, b1, w2, b2, top_k=TOP_K):
    xm = jnp.mean(x.astype(jnp.float32), axis=1)
    h = jax.nn.relu(xm @ w1 + b1.reshape(1, -1))
    gates = h @ w2 + b2.reshape(1, -1)
    probs = jax.nn.softmax(gates, axis=-1)
    w, i = jax.lax.top_k(probs, min(top_k, w2.shape[1]))
    w = w / jnp.sum(w, axis=-1, keepdims=True)
    return w, i.astype(jnp.int32)


# ---------------- main --------------------------------------------------------
if __name__ == "__main__":
    key = jax.random.PRNGKey(0)
    kx, k1, k2, k3, k4 = jax.random.split(key, 5)

    # deterministic synthetic parameters (shapes from nn.Linear in __init__)
    x  = jax.random.normal(kx, (BATCH, SEQ, INPUT_DIM), dtype=jnp.float32)
    w1 = jax.random.normal(k1, (INPUT_DIM, HIDDEN), dtype=jnp.float32) * (1.0 / INPUT_DIM ** 0.5)
    b1 = jax.random.normal(k2, (HIDDEN,), dtype=jnp.float32) * 0.01
    w2 = jax.random.normal(k3, (HIDDEN, NUM_EXPERTS), dtype=jnp.float32) * (1.0 / HIDDEN ** 0.5)
    b2 = jax.random.normal(k4, (NUM_EXPERTS,), dtype=jnp.float32) * 0.01

    # one-time weight prep (padding/reshape hoisted out of the per-call path)
    w1_p, b1_r, w2_p, b2_p, n_exp = prepare_gating_params(w1, b1, w2, b2)

    rw, idx = expert_gating(x, w1_p, b1_r, w2_p, b2_p,
                            num_experts=n_exp, top_k=TOP_K)
    jax.block_until_ready((rw, idx))

    rw_ref, idx_ref = expert_gating_ref(x, w1, b1, w2, b2)
    assert jnp.allclose(rw, rw_ref, atol=1e-5), (rw, rw_ref)
    assert jnp.array_equal(idx, idx_ref), (idx, idx_ref)

    print("KERNEL_OK")
</pallas_src>

<mosaic_0001>
module attributes {stable_mosaic.version = 11 : i64} {
  func.func @expert_gating_kernel(%arg0: i32, %arg1: memref<8x8x32xf32, #tpu.memory_space<vmem>>, %arg2: memref<32x256xf32, #tpu.memory_space<vmem>>, %arg3: memref<1x256xf32, #tpu.memory_space<vmem>>, %arg4: memref<256x128xf32, #tpu.memory_space<vmem>>, %arg5: memref<1x128xf32, #tpu.memory_space<vmem>>, %arg6: memref<8x128xf32, #tpu.memory_space<vmem>>, %arg7: memref<8x128xi32, #tpu.memory_space<vmem>>) attributes {dimension_semantics = [#tpu.dimension_semantics<parallel>], iteration_bounds = array<i64: 1>, scalar_prefetch = 0 : i64, scratch_operands = 0 : i64, tpu.core_type = #tpu.core_type<tc>, window_params = [{transform_indices = @transform_0, window_bounds = array<i64: 8, 8, 32>}, {pipeline_mode = #tpu.pipeline_mode<synchronous>, transform_indices = @transform_1, window_bounds = array<i64: 32, 256>}, {pipeline_mode = #tpu.pipeline_mode<synchronous>, transform_indices = @transform_2, window_bounds = array<i64: 1, 256>}, {pipeline_mode = #tpu.pipeline_mode<synchronous>, transform_indices = @transform_3, window_bounds = array<i64: 256, 128>}, {pipeline_mode = #tpu.pipeline_mode<synchronous>, transform_indices = @transform_4, window_bounds = array<i64: 1, 128>}, {transform_indices = @transform_5, window_bounds = array<i64: 8, 128>}, {transform_indices = @transform_6, window_bounds = array<i64: 8, 128>}]} {
    %c0 = arith.constant 0 : index
    %c0_0 = arith.constant 0 : index
    %c0_1 = arith.constant 0 : index
    %0 = vector.load %arg1[%c0, %c0_0, %c0_1] : memref<8x8x32xf32, #tpu.memory_space<vmem>>, vector<8x8x32xf32>
    %cst = arith.constant dense<0.000000e+00> : vector<8x32xf32>
    %1 = vector.multi_reduction <add>, %0, %cst [1] : vector<8x8x32xf32> to vector<8x32xf32>
    %cst_2 = arith.constant 8.000000e+00 : f32
    %2 = vector.broadcast %cst_2 : f32 to vector<8x32xf32>
    %3 = arith.divf %1, %2 : vector<8x32xf32>
    %c0_3 = arith.constant 0 : index
    %c0_4 = arith.constant 0 : index
    %4 = vector.load %arg2[%c0_3, %c0_4] : memref<32x256xf32, #tpu.memory_space<vmem>>, vector<32x256xf32>
    %cst_5 = arith.constant dense<0.000000e+00> : vector<8x256xf32>
    %5 = tpu.matmul %3, %4, %cst_5 {dimension_numbers = #tpu.dot_dimension_numbers<[1], [0], [0], [1], [0, 0, 1, 1], [], []>} : vector<8x32xf32>, vector<32x256xf32>, vector<8x256xf32> -> vector<8x256xf32>
    %c0_6 = arith.constant 0 : index
    %c0_7 = arith.constant 0 : index
    %6 = vector.load %arg3[%c0_6, %c0_7] : memref<1x256xf32, #tpu.memory_space<vmem>>, vector<1x256xf32>
    %7 = vector.broadcast %6 : vector<1x256xf32> to vector<8x256xf32>
    %8 = arith.addf %5, %7 : vector<8x256xf32>
    %cst_8 = arith.constant 0.000000e+00 : f32
    %9 = vector.broadcast %cst_8 : f32 to vector<8x256xf32>
    %10 = arith.maximumf %8, %9 : vector<8x256xf32>
    %c0_9 = arith.constant 0 : index
    %c0_10 = arith.constant 0 : index
    %11 = vector.load %arg4[%c0_9, %c0_10] : memref<256x128xf32, #tpu.memory_space<vmem>>, vector<256x128xf32>
    %cst_11 = arith.constant dense<0.000000e+00> : vector<8x128xf32>
    %12 = tpu.matmul %10, %11, %cst_11 {dimension_numbers = #tpu.dot_dimension_numbers<[1], [0], [0], [1], [0, 0, 1, 1], [], []>} : vector<8x256xf32>, vector<256x128xf32>, vector<8x128xf32> -> vector<8x128xf32>
    %c0_12 = arith.constant 0 : index
    %c0_13 = arith.constant 0 : index
    %13 = vector.load %arg5[%c0_12, %c0_13] : memref<1x128xf32, #tpu.memory_space<vmem>>, vector<1x128xf32>
    %14 = vector.broadcast %13 : vector<1x128xf32> to vector<8x128xf32>
    %15 = arith.addf %12, %14 : vector<8x128xf32>
    %16 = tpu.iota {dimensions = array<i32: 1>} : vector<8x128xi32>
    %c8_i32 = arith.constant 8 : i32
    %17 = vector.broadcast %c8_i32 : i32 to vector<8x128xi32>
    %18 = arith.cmpi slt, %16, %17 : vector<8x128xi32>
    %cst_14 = arith.constant 0xFF800000 : f32
    %19 = vector.broadcast %cst_14 : f32 to vector<8x128xf32>
    %20 = arith.select %18, %15, %19 : vector<8x128xi1>, vector<8x128xf32>
    %cst_15 = arith.constant dense<0xFF800000> : vector<8xf32>
    %21 = vector.multi_reduction <maximumf>, %20, %cst_15 [1] : vector<8x128xf32> to vector<8xf32>
    %22 = vector.shape_cast %21 : vector<8xf32> to vector<8x1xf32>
    %23 = vector.broadcast %22 : vector<8x1xf32> to vector<8x128xf32>
    %24 = arith.subf %20, %23 : vector<8x128xf32>
    %25 = math.exp %24 : vector<8x128xf32>
    %cst_16 = arith.constant dense<0.000000e+00> : vector<8xf32>
    %26 = vector.multi_reduction <add>, %25, %cst_16 [1] : vector<8x128xf32> to vector<8xf32>
    %27 = vector.shape_cast %26 : vector<8xf32> to vector<8x1xf32>
    %28 = vector.broadcast %27 : vector<8x1xf32> to vector<8x128xf32>
    %29 = arith.divf %25, %28 : vector<8x128xf32>
    %cst_17 = arith.constant dense<0xFF800000> : vector<8xf32>
    %30 = vector.multi_reduction <maximumf>, %29, %cst_17 [1] : vector<8x128xf32> to vector<8xf32>
    %31 = vector.shape_cast %30 : vector<8xf32> to vector<8x1xf32>
    %32 = vector.broadcast %31 : vector<8x1xf32> to vector<8x128xf32>
    %33 = arith.cmpf oeq, %29, %32 : vector<8x128xf32>
    %c128_i32 = arith.constant 128 : i32
    %34 = vector.broadcast %c128_i32 : i32 to vector<8x128xi32>
    %35 = arith.select %33, %16, %34 : vector<8x128xi1>, vector<8x128xi32>
    %cst_18 = arith.constant dense<2147483647> : vector<8xi32>
    %36 = vector.multi_reduction <minsi>, %35, %cst_18 [1] : vector<8x128xi32> to vector<8xi32>
    %37 = vector.shape_cast %36 : vector<8xi32> to vector<8x1xi32>
    %38 = vector.broadcast %37 : vector<8x1xi32> to vector<8x128xi32>
    %39 = arith.cmpi eq, %16, %38 : vector<8x128xi32>
    %cst_19 = arith.constant -1.000000e+00 : f32
    %40 = vector.broadcast %cst_19 : f32 to vector<8x128xf32>
    %41 = arith.select %39, %40, %29 : vector<8x128xi1>, vector<8x128xf32>
    %cst_20 = arith.constant dense<0xFF800000> : vector<8xf32>
    %42 = vector.multi_reduction <maximumf>, %41, %cst_20 [1] : vector<8x128xf32> to vector<8xf32>
    %43 = vector.shape_cast %42 : vector<8xf32> to vector<8x1xf32>
    %44 = vector.broadcast %43 : vector<8x1xf32> to vector<8x128xf32>
    %45 = arith.cmpf oeq, %41, %44 : vector<8x128xf32>
    %c128_i32_21 = arith.constant 128 : i32
    %46 = vector.broadcast %c128_i32_21 : i32 to vector<8x128xi32>
    %47 = arith.select %45, %16, %46 : vector<8x128xi1>, vector<8x128xi32>
    %cst_22 = arith.constant dense<2147483647> : vector<8xi32>
    %48 = vector.multi_reduction <minsi>, %47, %cst_22 [1] : vector<8x128xi32> to vector<8xi32>
    %49 = vector.shape_cast %48 : vector<8xi32> to vector<8x1xi32>
    %50 = arith.addf %31, %43 : vector<8x1xf32>
    %cst_23 = arith.constant 1.000000e+00 : f32
    %51 = vector.broadcast %cst_23 : f32 to vector<8x1xf32>
    %52 = arith.divf %51, %50 : vector<8x1xf32>
    %cst_24 = arith.constant 0.000000e+00 : f32
    %53 = vector.broadcast %cst_24 : f32 to vector<8x128xf32>
    %c0_i32 = arith.constant 0 : i32
    %54 = vector.broadcast %c0_i32 : i32 to vector<8x128xi32>
    %c0_i32_25 = arith.constant 0 : i32
    %55 = vector.broadcast %c0_i32_25 : i32 to vector<8x128xi32>
    %56 = arith.cmpi eq, %16, %55 : vector<8x128xi32>
    %57 = arith.mulf %31, %52 : vector<8x1xf32>
    %58 = vector.shape_cast %57 : vector<8x1xf32> to vector<8x1xf32>
    %59 = vector.broadcast %58 : vector<8x1xf32> to vector<8x128xf32>
    %60 = arith.select %56, %59, %53 : vector<8x128xi1>, vector<8x128xf32>
    %c0_i32_26 = arith.constant 0 : i32
    %61 = vector.broadcast %c0_i32_26 : i32 to vector<8x128xi32>
    %62 = arith.cmpi eq, %16, %61 : vector<8x128xi32>
    %63 = vector.shape_cast %37 : vector<8x1xi32> to vector<8x1xi32>
    %64 = vector.broadcast %63 : vector<8x1xi32> to vector<8x128xi32>
    %65 = arith.select %62, %64, %54 : vector<8x128xi1>, vector<8x128xi32>
    %c1_i32 = arith.constant 1 : i32
    %66 = vector.broadcast %c1_i32 : i32 to vector<8x128xi32>
    %67 = arith.cmpi eq, %16, %66 : vector<8x128xi32>
    %68 = arith.mulf %43, %52 : vector<8x1xf32>
    %69 = vector.shape_cast %68 : vector<8x1xf32> to vector<8x1xf32>
    %70 = vector.broadcast %69 : vector<8x1xf32> to vector<8x128xf32>
    %71 = arith.select %67, %70, %60 : vector<8x128xi1>, vector<8x128xf32>
    %c1_i32_27 = arith.constant 1 : i32
    %72 = vector.broadcast %c1_i32_27 : i32 to vector<8x128xi32>
    %73 = arith.cmpi eq, %16, %72 : vector<8x128xi32>
    %74 = vector.shape_cast %49 : vector<8x1xi32> to vector<8x1xi32>
    %75 = vector.broadcast %74 : vector<8x1xi32> to vector<8x128xi32>
    %76 = arith.select %73, %75, %65 : vector<8x128xi1>, vector<8x128xi32>
    %c0_28 = arith.constant 0 : index
    %c0_29 = arith.constant 0 : index
    %77 = vector.load %arg6[%c0_28, %c0_29] : memref<8x128xf32, #tpu.memory_space<vmem>>, vector<8x128xf32>
    tpu.vector_store %arg6[%c0_28, %c0_29], %71 {strides = array<i32>} : memref<8x128xf32, #tpu.memory_space<vmem>>, vector<8x128xf32>,
    %c0_30 = arith.constant 0 : index
    %c0_31 = arith.constant 0 : index
    %78 = vector.load %arg7[%c0_30, %c0_31] : memref<8x128xi32, #tpu.memory_space<vmem>>, vector<8x128xi32>
    tpu.vector_store %arg7[%c0_30, %c0_31], %76 {strides = array<i32>} : memref<8x128xi32, #tpu.memory_space<vmem>>, vector<8x128xi32>,
    return
  }
  func.func @transform_0(%arg0: i32) -> (i32, i32, i32) {
    %c0_i32 = arith.constant 0 : i32
    %c0_i32_0 = arith.constant 0 : i32
    %c0_i32_1 = arith.constant 0 : i32
    return %arg0, %c0_i32, %c0_i32_0 : i32, i32, i32
  }
  func.func @transform_1(%arg0: i32) -> (i32, i32) {
    %c0_i32 = arith.constant 0 : i32
    %c0_i32_0 = arith.constant 0 : i32
    %c0_i32_1 = arith.constant 0 : i32
    return %c0_i32, %c0_i32_0 : i32, i32
  }
  func.func @transform_2(%arg0: i32) -> (i32, i32) {
    %c0_i32 = arith.constant 0 : i32
    %c0_i32_0 = arith.constant 0 : i32
    %c0_i32_1 = arith.constant 0 : i32
    return %c0_i32, %c0_i32_0 : i32, i32
  }
  func.func @transform_3(%arg0: i32) -> (i32, i32) {
    %c0_i32 = arith.constant 0 : i32
    %c0_i32_0 = arith.constant 0 : i32
    %c0_i32_1 = arith.constant 0 : i32
    return %c0_i32, %c0_i32_0 : i32, i32
  }
  func.func @transform_4(%arg0: i32) -> (i32, i32) {
    %c0_i32 = arith.constant 0 : i32
    %c0_i32_0 = arith.constant 0 : i32
    %c0_i32_1 = arith.constant 0 : i32
    return %c0_i32, %c0_i32_0 : i32, i32
  }
  func.func @transform_5(%arg0: i32) -> (i32, i32) {
    %c0_i32 = arith.constant 0 : i32
    %c0_i32_0 = arith.constant 0 : i32
    return %arg0, %c0_i32 : i32, i32
  }
  func.func @transform_6(%arg0: i32) -> (i32, i32) {
    %c0_i32 = arith.constant 0 : i32
    %c0_i32_0 = arith.constant 0 : i32
    return %arg0, %c0_i32 : i32, i32
  }
}

</mosaic_0001>

<llo_original>
// kernel: expert_gating.1
$region0: #{expert_gating.1}
  #allocation0 [shape = 'u32[]', space=smem, size = 0x4, offset = 0x4, fixed_abs, tag = 'smem constant byte address 0x4 - core index']
  #allocation1 [shape = 'u32[72,128]{1,0:T(1,128)}', space=vmem, size = 0x9000, scoped, tag = 'internal scratch']
  %s0 = inlined_call_operand.vmem [shape: f32[8,8,32], index: 0, kind: input, shape index: {}]
  %s1 = inlined_call_operand.vmem [shape: f32[32,256], index: 1, kind: input, shape index: {}]
  %s2 = inlined_call_operand.vmem [shape: f32[1,256], index: 2, kind: input, shape index: {}]
  %s3 = inlined_call_operand.hbm [shape: f32[256,128], index: 3, kind: input, shape index: {}]
  %s4 = inlined_call_operand.vmem [shape: f32[1,128], index: 4, kind: input, shape index: {}]
  %s5 = inlined_call_operand.vmem [shape: f32[8,128], index: 5, kind: output, shape index: {0}]
  %s6 = inlined_call_operand.vmem [shape: s32[8,128], index: 6, kind: output, shape index: {1}]
  %7 = xla_tuple %s5, %s6
  %s8 = sld [smem:[#allocation0]]
  $region42: #{expert_gating.1} parent=0
    _
  %s10 = ssub.s32 1, %s8
  %s11 = scalar_select 0, %s10, %s8
  $region1: #{expert_gating.1} parent=0
    #allocation2 [shape = 'u8[131072]{0}', space=vmem, size = 0x20000, scoped, tag = 'input window, operand 3, single buffered']
    #allocation3 [shape = 's32[1]{0}', space=sflag, size = 0x4, scoped, tag = 'scoped memory for expert_gating.1']
    %12 = vsyncpa [#allocation3], 0
    // Predicated region
    $region2: #{expert_gating.1} parent=1 // pred_check
      _
    $region3: #{expert_gating.1} parent=1 // pred_check_branch
      %14 = sbr.rel (0) target = $region5
    $region4: #{expert_gating.1} parent=1 // pred_region
      _
    $region5: #{expert_gating.1} parent=1 // pred_fallthru
      _
    // Predicated region
    $region6: #{expert_gating.1} parent=1 // pred_check
      _
    $region7: #{expert_gating.1} parent=1 // pred_check_branch
      %16 = sbr.rel (0) target = $region9
    $region8: #{expert_gating.1} parent=1 // pred_region
      _
    $region9: #{expert_gating.1} parent=1 // pred_fallthru
      _
    // Predicated region
    $region10: #{expert_gating.1} parent=1 // pred_check
      _
    $region11: #{expert_gating.1} parent=1 // pred_check_branch
      %18 = sbr.rel (0) target = $region13
    $region12: #{expert_gating.1} parent=1 // pred_region
      _
    $region13: #{expert_gating.1} parent=1 // pred_fallthru
      _
    // Predicated region
    $region14: #{expert_gating.1} parent=1 // pred_check
      _
    $region15: #{expert_gating.1} parent=1 // pred_check_branch
      %20 = sbr.rel (0) target = $region17
    $region16: #{expert_gating.1} parent=1 // pred_region
      %22 = vsyncadd [#allocation3], 0
      %s23 = sshll.u32 %s3, 4
      %s24 = int_to_ptr.hbm [resolvable:$true] %s23
      %s25 = sshll.u32 [#allocation2], 4
      %s26 = int_to_ptr.vmem [resolvable:$true] %s25
      %31 = dma.hbm_to_vmem [thread:$0]  %s24, 4096, %s26, [#allocation3], 128, 128, 8
    $region17: #{expert_gating.1} parent=1 // pred_fallthru
      _
    // Predicated region
    $region18: #{expert_gating.1} parent=1 // pred_check
      _
    $region19: #{expert_gating.1} parent=1 // pred_check_branch
      %33 = sbr.rel (0) target = $region21
    $region20: #{expert_gating.1} parent=1 // pred_region
      _
    $region21: #{expert_gating.1} parent=1 // pred_fallthru
      _
    // Predicated region
    $region22: #{expert_gating.1} parent=1 // pred_check
      _
    $region23: #{expert_gating.1} parent=1 // pred_check_branch
      %35 = sbr.rel (0) target = $region25
    $region24: #{expert_gating.1} parent=1 // pred_region
      %37 = dma.done [#allocation3], 4096
    $region25: #{expert_gating.1} parent=1 // pred_fallthru
      _
    %v38 = vld [vmem:[%s0] sm:$0xff]
    %v39 = vld [vmem:[%s0 + $0x8] sm:$0xff]
    %v40 = vld [vmem:[%s0 + $0x10] sm:$0xff]
    %v41 = vld [vmem:[%s0 + $0x18] sm:$0xff]
    %v42 = vld [vmem:[%s0 + $0x20] sm:$0xff]
    %v43 = vld [vmem:[%s0 + $0x28] sm:$0xff]
    %v44 = vld [vmem:[%s0 + $0x30] sm:$0xff]
    %v45 = vld [vmem:[%s0 + $0x38] sm:$0xff]
    %vm46 = vcmask 261120
    %v47 = vsel %vm46, %v38, 0.0
    %v48 = vrot.slane %v47, 4
    %v49 = vadd.f32 %v47, %v48
    %v50 = vrot.slane %v49, 2
    %v51 = vadd.f32 %v49, %v50
    %v52 = vrot.slane %v51, 1
    %v53 = vadd.f32 %v51, %v52
    %v54 = vsel %vm46, %v39, 0.0
    %v55 = vrot.slane %v54, 4
    %v56 = vadd.f32 %v54, %v55
    %v57 = vrot.slane %v56, 2
    %v58 = vadd.f32 %v56, %v57
    %v59 = vrot.slane %v58, 1
    %v60 = vadd.f32 %v58, %v59
    %v61 = vsel %vm46, %v40, 0.0
    %v62 = vrot.slane %v61, 4
    %v63 = vadd.f32 %v61, %v62
    %v64 = vrot.slane %v63, 2
    %v65 = vadd.f32 %v63, %v64
    %v66 = vrot.slane %v65, 1
    %v67 = vadd.f32 %v65, %v66
    %v68 = vsel %vm46, %v41, 0.0
    %v69 = vrot.slane %v68, 4
    %v70 = vadd.f32 %v68, %v69
    %v71 = vrot.slane %v70, 2
    %v72 = vadd.f32 %v70, %v71
    %v73 = vrot.slane %v72, 1
    %v74 = vadd.f32 %v72, %v73
    %v75 = vsel %vm46, %v42, 0.0
    %v76 = vrot.slane %v75, 4
    %v77 = vadd.f32 %v75, %v76
    %v78 = vrot.slane %v77, 2
    %v79 = vadd.f32 %v77, %v78
    %v80 = vrot.slane %v79, 1
    %v81 = vadd.f32 %v79, %v80
    %v82 = vsel %vm46, %v43, 0.0
    %v83 = vrot.slane %v82, 4
    %v84 = vadd.f32 %v82, %v83
    %v85 = vrot.slane %v84, 2
    %v86 = vadd.f32 %v84, %v85
    %v87 = vrot.slane %v86, 1
    %v88 = vadd.f32 %v86, %v87
    %v89 = vsel %vm46, %v44, 0.0
    %v90 = vrot.slane %v89, 4
    %v91 = vadd.f32 %v89, %v90
    %v92 = vrot.slane %v91, 2
    %v93 = vadd.f32 %v91, %v92
    %v94 = vrot.slane %v93, 1
    %v95 = vadd.f32 %v93, %v94
    %v96 = vsel %vm46, %v45, 0.0
    %v97 = vrot.slane %v96, 4
    %v98 = vadd.f32 %v96, %v97
    %v99 = vrot.slane %v98, 2
    %v100 = vadd.f32 %v98, %v99
    %v101 = vrot.slane %v100, 1
    %v102 = vadd.f32 %v100, %v101
    %v103 = vrcp.pop 8.0
    %v104 = vmul.f32 8.0, %v103
    %v105 = vsub.f32 1.0, %v104
    %v106 = vmul.f32 %v103, %v105
    %v107 = vadd.f32 %v103, %v106
    %vm108 = vweird.f32 %v103
    %v109 = vsel %vm108, %v103, %v107
    %v110 = vmul.f32 %v53, %v109
    %v111 = vmul.f32 %v60, %v109
    %v112 = vmul.f32 %v67, %v109
    %v113 = vmul.f32 %v74, %v109
    %v114 = vmul.f32 %v81, %v109
    %v115 = vmul.f32 %v88, %v109
    %v116 = vmul.f32 %v95, %v109
    %v117 = vmul.f32 %v102, %v109
    %v118 = vld [vmem:[%s1] sm:$0xff]
    %v119 = vld [vmem:[%s1 + $0x8] sm:$0xff]
    %v120 = vld [vmem:[%s1 + $0x10] sm:$0xff]
    %v121 = vld [vmem:[%s1 + $0x18] sm:$0xff]
    %v122 = vld [vmem:[%s1 + $0x20] sm:$0xff]
    %v123 = vld [vmem:[%s1 + $0x28] sm:$0xff]
    %v124 = vld [vmem:[%s1 + $0x30] sm:$0xff]
    %v125 = vld [vmem:[%s1 + $0x38] sm:$0xff]
    %v126 = vld [vmem:[%s2] sm:$0x3]
    %v128 = vperm.slane %v126, 0
    %v129 = vperm.slane %v126, 1
    %vm140 = vcmask 1041409
    %v141 = vsel %vm140, %v111, %v110
    %vm142 = vcmask 1042434
    %v143 = vsel %vm142, %v112, %v141
    %vm144 = vcmask 1043459
    %v145 = vsel %vm144, %v113, %v143
    %vm146 = vcmask 1044484
    %v147 = vsel %vm146, %v114, %v145
    %vm148 = vcmask 1045509
    %v149 = vsel %vm148, %v115, %v147
    %vm150 = vcmask 1046534
    %v151 = vsel %vm150, %v116, %v149
    %vm152 = vcmask 1047559
    %v153 = vsel %vm152, %v117, %v151
    %v154 = vsel %vm46, %v153, 0
    %156 = vmatpush.msra.mxu0 0.0
    %157 = vmatpush.msra.mxu0 0.0
    %158 = vmatpush.msra.mxu0 0.0
    %159 = vmatpush.msra.mxu0 0.0
    %160 = vmatpush.msra.mxu0 0.0
    %161 = vmatpush.msra.mxu0 0.0
    %162 = vmatpush.msra.mxu0 0.0
    %163 = vmatpush.msra.mxu0 0.0
    %164 = vmatpush.msra.mxu0 0.0
    %165 = vmatpush.msra.mxu0 0.0
    %166 = vmatpush.msra.mxu0 0.0
    %167 = vmatpush.msra.mxu0 0.0
    %168 = vmatpush.msra.mxu0 %v124
    %169 = vmatpush.msra.mxu0 %v122
    %170 = vmatpush.msra.mxu0 %v120
    %171 = vmatpush.msra.mxu0 %v118
    %172 = vmatmul.f32.gmra.mxu0 %v154
    %v173 = vpop.f32.mrf.mxu0
    %v174 = vadd.f32 %v128, %v173
    %175 = vdwg.mxu0
    %176 = vmatpush.msra.mxu0 0.0
    %177 = vmatpush.msra.mxu0 0.0
    %178 = vmatpush.msra.mxu0 0.0
    %179 = vmatpush.msra.mxu0 0.0
    %180 = vmatpush.msra.mxu0 0.0
    %181 = vmatpush.msra.mxu0 0.0
    %182 = vmatpush.msra.mxu0 0.0
    %183 = vmatpush.msra.mxu0 0.0
    %184 = vmatpush.msra.mxu0 0.0
    %185 = vmatpush.msra.mxu0 0.0
    %186 = vmatpush.msra.mxu0 0.0
    %187 = vmatpush.msra.mxu0 0.0
    %188 = vmatpush.msra.mxu0 %v125
    %189 = vmatpush.msra.mxu0 %v123
    %190 = vmatpush.msra.mxu0 %v121
    %191 = vmatpush.msra.mxu0 %v119
    %192 = vmatmul.f32.gmra.mxu0 %v154
    %v193 = vpop.f32.mrf.mxu0
    %v194 = vadd.f32 %v129, %v193
    %195 = vdwg.mxu0
    %v196 = vmax.f32 %v174, 0.0
    %v197 = vmax.f32 %v194, 0.0
    %v198 = vld [vmem:[#allocation2] sm:$0xff]
    %v199 = vld [vmem:[#allocation2 + $0x8] sm:$0xff]
    %v200 = vld [vmem:[#allocation2 + $0x10] sm:$0xff]
    %v201 = vld [vmem:[#allocation2 + $0x18] sm:$0xff]
    %v202 = vld [vmem:[#allocation2 + $0x20] sm:$0xff]
    %v203 = vld [vmem:[#allocation2 + $0x28] sm:$0xff]
    %v204 = vld [vmem:[#allocation2 + $0x30] sm:$0xff]
    %v205 = vld [vmem:[#allocation2 + $0x38] sm:$0xff]
    %v206 = vld [vmem:[#allocation2 + $0x40] sm:$0xff]
    %v207 = vld [vmem:[#allocation2 + $0x48] sm:$0xff]
    %v208 = vld [vmem:[#allocation2 + $0x50] sm:$0xff]
    %v209 = vld [vmem:[#allocation2 + $0x58] sm:$0xff]
    %v210 = vld [vmem:[#allocation2 + $0x60] sm:$0xff]
    %v211 = vld [vmem:[#allocation2 + $0x68] sm:$0xff]
    %v212 = vld [vmem:[#allocation2 + $0x70] sm:$0xff]
    %v213 = vld [vmem:[#allocation2 + $0x78] sm:$0xff]
    %v214 = vld [vmem:[#allocation2 + $0x80] sm:$0xff]
    %v215 = vld [vmem:[#allocation2 + $0x88] sm:$0xff]
    %v216 = vld [vmem:[#allocation2 + $0x90] sm:$0xff]
    %v217 = vld [vmem:[#allocation2 + $0x98] sm:$0xff]
    %v218 = vld [vmem:[#allocation2 + $0xa0] sm:$0xff]
    %v219 = vld [vmem:[#allocation2 + $0xa8] sm:$0xff]
    %v220 = vld [vmem:[#allocation2 + $0xb0] sm:$0xff]
    %v221 = vld [vmem:[#allocation2 + $0xb8] sm:$0xff]
    %v222 = vld [vmem:[#allocation2 + $0xc0] sm:$0xff]
    %v223 = vld [vmem:[#allocation2 + $0xc8] sm:$0xff]
    %v224 = vld [vmem:[#allocation2 + $0xd0] sm:$0xff]
    %v225 = vld [vmem:[#allocation2 + $0xd8] sm:$0xff]
    %v226 = vld [vmem:[#allocation2 + $0xe0] sm:$0xff]
    %v227 = vld [vmem:[#allocation2 + $0xe8] sm:$0xff]
    %v228 = vld [vmem:[#allocation2 + $0xf0] sm:$0xff]
    %v229 = vld [vmem:[#allocation2 + $0xf8] sm:$0xff]
    %v230 = vld [vmem:[%s4] sm:$0x1]
    %v232 = vperm.slane %v230, 0
    %234 = vmatpush.msra.mxu0 %v213
    %235 = vmatpush.msra.mxu0 %v212
    %236 = vmatpush.msra.mxu0 %v211
    %237 = vmatpush.msra.mxu0 %v210
    %238 = vmatpush.msra.mxu0 %v209
    %239 = vmatpush.msra.mxu0 %v208
    %240 = vmatpush.msra.mxu0 %v207
    %241 = vmatpush.msra.mxu0 %v206
    %242 = vmatpush.msra.mxu0 %v205
    %243 = vmatpush.msra.mxu0 %v204
    %244 = vmatpush.msra.mxu0 %v203
    %245 = vmatpush.msra.mxu0 %v202
    %246 = vmatpush.msra.mxu0 %v201
    %247 = vmatpush.msra.mxu0 %v200
    %248 = vmatpush.msra.mxu0 %v199
    %249 = vmatpush.msra.mxu0 %v198
    %250 = vmatmul.f32.gmra.mxu0 %v196
    %v251 = vpop.f32.mrf.mxu0
    %v252 = vadd.f32 %v232, %v251
    %253 = vdwg.mxu0
    %254 = vmatpush.msra.mxu0 %v229
    %255 = vmatpush.msra.mxu0 %v228
    %256 = vmatpush.msra.mxu0 %v227
    %257 = vmatpush.msra.mxu0 %v226
    %258 = vmatpush.msra.mxu0 %v225
    %259 = vmatpush.msra.mxu0 %v224
    %260 = vmatpush.msra.mxu0 %v223
    %261 = vmatpush.msra.mxu0 %v222
    %262 = vmatpush.msra.mxu0 %v221
    %263 = vmatpush.msra.mxu0 %v220
    %264 = vmatpush.msra.mxu0 %v219
    %265 = vmatpush.msra.mxu0 %v218
    %266 = vmatpush.msra.mxu0 %v217
    %267 = vmatpush.msra.mxu0 %v216
    %268 = vmatpush.msra.mxu0 %v215
    %269 = vmatpush.msra.mxu0 %v214
    %270 = vmatmul.f32.gmra.mxu0 %v197
    %v271 = vpop.f32.mrf.mxu0
    %v272 = vadd.f32 %v252, %v271
    %273 = vdwg.mxu0
    %v274 = vlaneseq
    %v275 = vand.u32 %v274, 127
    %vm276 = vcmp.lt.s32.totalorder %v275, 8
    %v277 = vsel %vm276, %v272, -inf
    %278 = vmax.xlane.f32.xlu0 %v277
    %v279 = vpop.xlane.xlu0 %278
    %v280 = vsub.f32 %v277, %v279
    %v281 = vmul.f32 %v280, 1.442695
    %v282 = vpow.pop %v281
    %283 = vadd.xlane.f32.xlu0 %v282
    %v284 = vpop.xlane.xlu0 %283
    %v285 = vrcp.pop %v284
    %v286 = vmul.f32 %v284, %v285
    %v287 = vsub.f32 1.0, %v286
    %v288 = vmul.f32 %v285, %v287
    %v289 = vadd.f32 %v285, %v288
    %vm290 = vweird.f32 %v284
    %vm291 = vweird.f32 %v285
    %vm292 = vmor %vm290, %vm291
    %v293 = vsel %vm292, %v285, %v289
    %v294 = vand.u32 2147483647, %v284
    %vm295 = vcmp.eq.f32.partialorder %v294, 8.507059e+37
    %v296 = vand.u32 %v284, 2147483648
    %v297 = vor.u32 1.1754944e-38, %v296
    %v298 = vsel %vm295, %v297, %v293
    %v299 = vmul.f32 %v282, %v298
    %300 = vmax.xlane.f32.xlu0 %v299
    %v301 = vpop.xlane.xlu0 %300
    %vm302 = vcmp.eq.f32.partialorder %v299, %v301
    %v303 = vsel %vm302, %v275, 128
    %v304 = vand.u32 %v303, 65535
    %v305 = vshra.s32 %v303, 16
    %v306 = vcvt.s32.f32 %v304
    %v307 = vcvt.s32.f32 %v305
    %308 = vmin.xlane.f32.xlu0 %v307
    %v309 = vpop.xlane.xlu0 %308
    %vm310 = vcmp.eq.f32.partialorder %v307, %v309
    %v311 = vsel %vm310, %v306, inf
    %312 = vmin.xlane.f32.xlu0 %v311
    %v313 = vpop.xlane.xlu0 %312
    %v314 = vcvt.f32.s32 %v313
    %v315 = vcvt.f32.s32 %v309
    %v316 = vshll.u32 %v315, 16
    %v317 = vadd.s32 %v316, %v314
    %vm318 = vcmp.eq.s32.totalorder %v275, %v317
    %v319 = vsel %vm318, -1.0, %v299
    %320 = vmax.xlane.f32.xlu0 %v319
    %v321 = vpop.xlane.xlu0 %320
    %vm322 = vcmp.eq.f32.partialorder %v319, %v321
    %v323 = vsel %vm322, %v275, 128
    %v324 = vand.u32 %v323, 65535
    %v325 = vshra.s32 %v323, 16
    %v326 = vcvt.s32.f32 %v324
    %v327 = vcvt.s32.f32 %v325
    %328 = vmin.xlane.f32.xlu0 %v327
    %v329 = vpop.xlane.xlu0 %328
    %vm330 = vcmp.eq.f32.partialorder %v327, %v329
    %v331 = vsel %vm330, %v326, inf
    %332 = vmin.xlane.f32.xlu0 %v331
    %v333 = vpop.xlane.xlu0 %332
    %v334 = vcvt.f32.s32 %v333
    %v335 = vcvt.f32.s32 %v329
    %v336 = vshll.u32 %v335, 16
    %v337 = vadd.s32 %v336, %v334
    %v338 = vadd.f32 %v301, %v321
    %v339 = vrcp.pop %v338
    %v340 = vmul.f32 %v338, %v339
    %v341 = vsub.f32 1.0, %v340
    %v342 = vmul.f32 %v339, %v341
    %v343 = vadd.f32 %v339, %v342
    %vm344 = vweird.f32 %v338
    %vm345 = vweird.f32 %v339
    %vm346 = vmor %vm344, %vm345
    %v347 = vsel %vm346, %v339, %v343
    %v348 = vand.u32 2147483647, %v338
    %vm349 = vcmp.eq.f32.partialorder %v348, 8.507059e+37
    %v350 = vand.u32 %v338, 2147483648
    %v351 = vor.u32 1.1754944e-38, %v350
    %v352 = vsel %vm349, %v351, %v347
    %v353 = vmul.f32 1.0, %v352
    %vm354 = vcmp.eq.s32.totalorder %v275, 0
    %v355 = vmul.f32 %v301, %v353
    %v356 = vsel %vm354, %v355, 0.0
    %v357 = vsel %vm354, %v317, 0
    %vm358 = vcmp.eq.s32.totalorder %v275, 1
    %v359 = vmul.f32 %v321, %v353
    %v360 = vsel %vm358, %v359, %v356
    %v361 = vsel %vm358, %v337, %v357
    %362 = vst [vmem:[%s5] sm:$0xff] %v360
    %363 = vst [vmem:[%s6] sm:$0xff] %v361
    // Predicated region
    $region26: #{expert_gating.1} parent=1 // pred_check
      _
    $region27: #{expert_gating.1} parent=1 // pred_check_branch
      %365 = sbr.rel (0) target = $region29
    $region28: #{expert_gating.1} parent=1 // pred_region
      _
    $region29: #{expert_gating.1} parent=1 // pred_fallthru
      _
    // Predicated region
    $region30: #{expert_gating.1} parent=1 // pred_check
      _
    $region31: #{expert_gating.1} parent=1 // pred_check_branch
      %367 = sbr.rel (0) target = $region33
    $region32: #{expert_gating.1} parent=1 // pred_region
      _
    $region33: #{expert_gating.1} parent=1 // pred_fallthru
      _
    // Predicated region
    $region34: #{expert_gating.1} parent=1 // pred_check
      _
    $region35: #{expert_gating.1} parent=1 // pred_check_branch
      %369 = sbr.rel (0) target = $region37
    $region36: #{expert_gating.1} parent=1 // pred_region
      _
    $region37: #{expert_gating.1} parent=1 // pred_fallthru
      _
    // Predicated region
    $region38: #{expert_gating.1} parent=1 // pred_check
      _
    $region39: #{expert_gating.1} parent=1 // pred_check_branch
      %371 = sbr.rel (0) target = $region41
    $region40: #{expert_gating.1} parent=1 // pred_region
      _
    $region41: #{expert_gating.1} parent=1 // pred_fallthru
      _
    %372 = vsyncpa [#allocation3], 1

</llo_original>
